<compile_context>
chip_gen: v5e
topology: v5e:2x2
jax: 0.10.0
libtpu: 0.0.40
codegen_flags: <defaults>
</compile_context>

<pallas_src>
import functools

import jax
import jax.numpy as jnp
from jax import lax
from jax.experimental import pallas as pl
from jax.experimental.pallas import tpu as pltpu


def _mha_kernel(x_ref, wqkv_ref, bqkv_ref, wo_ref, bo_ref, o_ref, av_ref, *,
                num_heads):
    """One grid step = one batch element (grid axis marked "parallel")."""
    P, E = x_ref.shape
    H = num_heads
    D = E // H
    cdt = x_ref.dtype            # MXU operand dtype (bf16 in production configs)

    x = x_ref[...]                                                  # (P, E)

    # Fused Q/K/V projection: one big matmul, f32 accumulation, ONE cast back
    # to the compute dtype. 1/sqrt(D) is pre-folded into the Q columns of
    # w_qkv / b_qkv at parameter-prep time, so no in-kernel rescale.
    qkv = (jnp.dot(x, wqkv_ref[...], preferred_element_type=jnp.float32)
           + bqkv_ref[...]).astype(cdt)                             # (P, 3E)

    # TODO(synk): attention dropout is identity in eval mode (training=False),
    # so it is intentionally omitted here.
    # TODO(synk): for production P on v7x (64 MiB VMEM, 2 TCs), add a second
    # "parallel" grid axis over query tiles (flash-style) to bound the (P, P)
    # score tile and keep both TensorCores fed; unnecessary at these shapes.
    # TODO(synk): for large H (>= 8-16), convert this static loop to
    # lax.fori_loop(..., unroll=2) to bound vreg live ranges / avoid spills.
    for h in range(H):
        q_h = qkv[:, h * D:(h + 1) * D]                             # (P, D) pre-scaled
        k_h = qkv[:, E + h * D:E + (h + 1) * D]                     # (P, D)
        v_h = qkv[:, 2 * E + h * D:2 * E + (h + 1) * D]             # (P, D)

        # q_h @ k_h^T without materializing a transpose: contract dim 1 of both.
        s = lax.dot_general(q_h, k_h,
                            dimension_numbers=(((1,), (1,)), ((), ())),
                            preferred_element_type=jnp.float32)     # (P, P)

        # f32 softmax over the last axis (matches torch softmax(dtype=float32)).
        # NOTE: approx reciprocal => rows sum to 1 only to ~1e-3 relative; use
        # approx=False if torch-exact softmax parity is required.
        s = s - jnp.max(s, axis=-1, keepdims=True)
        e = jnp.exp(s)
        p = e * pl.reciprocal(jnp.sum(e, axis=-1, keepdims=True), approx=True)

        # Write this head's attention output into the concat scratch at its
        # lane offset; the output projection below then runs as a single
        # full-contraction (K = E) matmul instead of H skinny K = D matmuls
        # plus H f32 read-modify-write passes over a (P, E) accumulator.
        av_ref[:, h * D:(h + 1) * D] = jnp.dot(
            p.astype(cdt), v_h, preferred_element_type=jnp.float32).astype(cdt)

    out = jnp.dot(av_ref[...], wo_ref[...],
                  preferred_element_type=jnp.float32)               # (P, E)
    o_ref[...] = (out + bo_ref[...]).astype(o_ref.dtype)


def prepare_mha_params(wq, bq, wk, bk, wv, bv, wo, bo, *, num_heads):
    """One-time parameter preparation (do NOT call per forward pass).

    Fuses Q/K/V weights/biases into a single (E, 3E) / (1, 3E) pair and folds
    the 1/sqrt(head_dim) attention scale into the Q columns.
    """
    E = wq.shape[0]
    D = E // num_heads
    scale = D ** -0.5
    w_qkv = jnp.concatenate([wq * scale, wk, wv], axis=1)            # (E, 3E)
    b_qkv = jnp.concatenate([bq * scale, bk, bv], axis=0).reshape(1, 3 * E)
    b_o = bo.reshape(1, E)
    return w_qkv, b_qkv, wo, b_o


def mha_forward(x, w_qkv, b_qkv, wo, b_o, *, num_heads):
    B, P, E = x.shape
    if E % num_heads != 0:
        raise ValueError(f"embed_dim {E} not divisible by num_heads {num_heads}")

    x_spec = pl.BlockSpec((pl.Squeezed(), P, E), lambda b: (b, 0, 0))
    out_spec = pl.BlockSpec((pl.Squeezed(), P, E), lambda b: (b, 0, 0))

    # Grid-invariant operands: constant index_map, so single-buffer them
    # (halves the resident weight VMEM footprint vs. the default Buffered(2)).
    w_qkv_spec = pl.BlockSpec((E, 3 * E), lambda b: (0, 0),
                              pipeline_mode=pl.Buffered(1))
    b_qkv_spec = pl.BlockSpec((1, 3 * E), lambda b: (0, 0),
                              pipeline_mode=pl.Buffered(1))
    wo_spec = pl.BlockSpec((E, E), lambda b: (0, 0),
                           pipeline_mode=pl.Buffered(1))
    bo_spec = pl.BlockSpec((1, E), lambda b: (0, 0),
                           pipeline_mode=pl.Buffered(1))

    # Advisory roofline: QKV proj + scores + AV + out proj; exp count for EUP.
    flops = (2 * B * P * E * 3 * E          # fused QKV projection
             + 4 * B * P * P * E            # scores + attention*V
             + 2 * B * P * E * E)           # output projection
    transcendentals = B * num_heads * P * P
    itemsize = jnp.dtype(x.dtype).itemsize
    bytes_accessed = (2 * B * P * E                       # x in, out
                      + E * 3 * E + 3 * E                 # fused QKV w/b
                      + E * E + E) * itemsize             # out-proj w/b
    cost = pl.CostEstimate(flops=flops,
                           transcendentals=transcendentals,
                           bytes_accessed=bytes_accessed)

    return pl.pallas_call(
        functools.partial(_mha_kernel, num_heads=num_heads),
        out_shape=jax.ShapeDtypeStruct((B, P, E), x.dtype),
        grid=(B,),
        in_specs=[x_spec, w_qkv_spec, b_qkv_spec, wo_spec, bo_spec],
        out_specs=out_spec,
        # Head-concat scratch in the compute dtype (bf16 in production).
        scratch_shapes=[pltpu.VMEM((P, E), x.dtype)],
        compiler_params=pltpu.CompilerParams(
            dimension_semantics=("parallel",),
            vmem_limit_bytes=48 * 1024 * 1024),
        cost_estimate=cost,
    )(x, w_qkv, b_qkv, wo, b_o)


def ref_mha(x, wq, bq, wk, bk, wv, bv, wo, bo, num_heads):
    """Pure-JAX reference mirroring the PyTorch forward."""
    B, P, E = x.shape
    H = num_heads
    D = E // H
    q = (x @ wq + bq).reshape(B, P, H, D).transpose(0, 2, 1, 3)
    k = (x @ wk + bk).reshape(B, P, H, D).transpose(0, 2, 1, 3)
    v = (x @ wv + bv).reshape(B, P, H, D).transpose(0, 2, 1, 3)
    s = jnp.einsum('bhpd,bhqd->bhpq', q, k) * D ** -0.5
    p = jax.nn.softmax(s.astype(jnp.float32), axis=-1).astype(q.dtype)
    av = jnp.einsum('bhpq,bhqd->bhpd', p, v)
    out = av.transpose(0, 2, 1, 3).reshape(B, P, E)
    return out @ wo + bo


if __name__ == "__main__":
    # Small config: hidden_dim=32, num_attn_heads=4, seq (patches)=8, batch=2.
    # NOTE: these demo shapes are far below the (8,128) tile width; production
    # validation should use E a multiple of 128 and P a multiple of 8.
    B, P, E, H = 2, 8, 32, 4

    key = jax.random.PRNGKey(0)
    keys = jax.random.split(key, 9)
    x = jax.random.normal(keys[0], (B, P, E), dtype=jnp.float32)

    def init_w(k):
        return 0.02 * jax.random.normal(k, (E, E), dtype=jnp.float32)

    def init_b(k):
        return 0.02 * jax.random.normal(k, (E,), dtype=jnp.float32)

    wq, wk, wv, wo = init_w(keys[1]), init_w(keys[2]), init_w(keys[3]), init_w(keys[4])
    bq, bk, bv, bo = init_b(keys[5]), init_b(keys[6]), init_b(keys[7]), init_b(keys[8])

    # One-time parameter prep (fusion + scale fold), then the Pallas forward.
    w_qkv, b_qkv, wo_p, b_o = prepare_mha_params(
        wq, bq, wk, bk, wv, bv, wo, bo, num_heads=H)
    out = mha_forward(x, w_qkv, b_qkv, wo_p, b_o, num_heads=H)
    out = jax.block_until_ready(out)

    ref = ref_mha(x, wq, bq, wk, bk, wv, bv, wo, bo, H)
    assert out.shape == (B, P, E), out.shape
    # Tolerance covers the approx-reciprocal softmax denominator; all matmul
    # accumulation stays in f32.
    assert jnp.allclose(out, ref, atol=5e-4, rtol=5e-4), \
        f"max err {jnp.max(jnp.abs(out - ref))}"

    print("KERNEL_OK")
</pallas_src>

<mosaic_0001>
module attributes {stable_mosaic.version = 11 : i64} {
  func.func @_mha_kernel(%arg0: i32, %arg1: memref<1x8x32xf32, #tpu.memory_space<vmem>>, %arg2: memref<32x96xf32, #tpu.memory_space<vmem>>, %arg3: memref<1x96xf32, #tpu.memory_space<vmem>>, %arg4: memref<32x32xf32, #tpu.memory_space<vmem>>, %arg5: memref<1x32xf32, #tpu.memory_space<vmem>>, %arg6: memref<1x8x32xf32, #tpu.memory_space<vmem>>, %arg7: memref<8x32xf32, #tpu.memory_space<vmem>>) attributes {dimension_semantics = [#tpu.dimension_semantics<parallel>], iteration_bounds = array<i64: 2>, scalar_prefetch = 0 : i64, scratch_operands = 1 : i64, tpu.core_type = #tpu.core_type<tc>, window_params = [{transform_indices = @transform_0, window_bounds = array<i64: 1, 8, 32>}, {pipeline_mode = #tpu.pipeline_mode<synchronous>, transform_indices = @transform_1, window_bounds = array<i64: 32, 96>}, {pipeline_mode = #tpu.pipeline_mode<synchronous>, transform_indices = @transform_2, window_bounds = array<i64: 1, 96>}, {pipeline_mode = #tpu.pipeline_mode<synchronous>, transform_indices = @transform_3, window_bounds = array<i64: 32, 32>}, {pipeline_mode = #tpu.pipeline_mode<synchronous>, transform_indices = @transform_4, window_bounds = array<i64: 1, 32>}, {transform_indices = @transform_5, window_bounds = array<i64: 1, 8, 32>}]} {
    %c0 = arith.constant 0 : index
    %c0_0 = arith.constant 0 : index
    %c0_1 = arith.constant 0 : index
    %0 = vector.load %arg1[%c0, %c0_0, %c0_1] : memref<1x8x32xf32, #tpu.memory_space<vmem>>, vector<1x8x32xf32>
    %1 = vector.shape_cast %0 : vector<1x8x32xf32> to vector<8x32xf32>
    %c0_2 = arith.constant 0 : index
    %c0_3 = arith.constant 0 : index
    %2 = vector.load %arg2[%c0_2, %c0_3] : memref<32x96xf32, #tpu.memory_space<vmem>>, vector<32x96xf32>
    %cst = arith.constant dense<0.000000e+00> : vector<8x96xf32>
    %3 = tpu.matmul %1, %2, %cst {dimension_numbers = #tpu.dot_dimension_numbers<[1], [0], [0], [1], [0, 0, 1, 1], [], []>} : vector<8x32xf32>, vector<32x96xf32>, vector<8x96xf32> -> vector<8x96xf32>
    %c0_4 = arith.constant 0 : index
    %c0_5 = arith.constant 0 : index
    %4 = vector.load %arg3[%c0_4, %c0_5] : memref<1x96xf32, #tpu.memory_space<vmem>>, vector<1x96xf32>
    %5 = vector.broadcast %4 : vector<1x96xf32> to vector<8x96xf32>
    %6 = arith.addf %3, %5 : vector<8x96xf32>
    %7 = vector.extract_strided_slice %6 {offsets = [0, 0], sizes = [8, 8], strides = [1, 1]} : vector<8x96xf32> to vector<8x8xf32>
    %8 = vector.extract_strided_slice %6 {offsets = [0, 32], sizes = [8, 8], strides = [1, 1]} : vector<8x96xf32> to vector<8x8xf32>
    %9 = vector.extract_strided_slice %6 {offsets = [0, 64], sizes = [8, 8], strides = [1, 1]} : vector<8x96xf32> to vector<8x8xf32>
    %cst_6 = arith.constant dense<0.000000e+00> : vector<8x8xf32>
    %10 = tpu.matmul %7, %8, %cst_6 {dimension_numbers = #tpu.dot_dimension_numbers<[1], [1], [0], [0], [0, 0, 1, 0], [], []>} : vector<8x8xf32>, vector<8x8xf32>, vector<8x8xf32> -> vector<8x8xf32>
    %cst_7 = arith.constant dense<0xFF800000> : vector<8xf32>
    %11 = vector.multi_reduction <maximumf>, %10, %cst_7 [1] : vector<8x8xf32> to vector<8xf32>
    %12 = vector.shape_cast %11 : vector<8xf32> to vector<8x1xf32>
    %13 = vector.broadcast %12 : vector<8x1xf32> to vector<8x8xf32>
    %14 = arith.subf %10, %13 : vector<8x8xf32>
    %15 = math.exp %14 : vector<8x8xf32>
    %cst_8 = arith.constant dense<0.000000e+00> : vector<8xf32>
    %16 = vector.multi_reduction <add>, %15, %cst_8 [1] : vector<8x8xf32> to vector<8xf32>
    %17 = vector.shape_cast %16 : vector<8xf32> to vector<8x1xf32>
    %18 = tpu.reciprocal %17 {approx = true} : vector<8x1xf32> -> vector<8x1xf32>
    %19 = vector.broadcast %18 : vector<8x1xf32> to vector<8x8xf32>
    %20 = arith.mulf %15, %19 : vector<8x8xf32>
    %cst_9 = arith.constant dense<0.000000e+00> : vector<8x8xf32>
    %21 = tpu.matmul %20, %9, %cst_9 {dimension_numbers = #tpu.dot_dimension_numbers<[1], [0], [0], [1], [0, 0, 1, 1], [], []>} : vector<8x8xf32>, vector<8x8xf32>, vector<8x8xf32> -> vector<8x8xf32>
    %c0_10 = arith.constant 0 : index
    %c0_11 = arith.constant 0 : index
    %22 = vector.load %arg7[%c0_10, %c0_11] : memref<8x32xf32, #tpu.memory_space<vmem>>, vector<8x8xf32>
    tpu.vector_store %arg7[%c0_10, %c0_11], %21 {strides = array<i32>} : memref<8x32xf32, #tpu.memory_space<vmem>>, vector<8x8xf32>,
    %23 = vector.extract_strided_slice %6 {offsets = [0, 8], sizes = [8, 8], strides = [1, 1]} : vector<8x96xf32> to vector<8x8xf32>
    %24 = vector.extract_strided_slice %6 {offsets = [0, 40], sizes = [8, 8], strides = [1, 1]} : vector<8x96xf32> to vector<8x8xf32>
    %25 = vector.extract_strided_slice %6 {offsets = [0, 72], sizes = [8, 8], strides = [1, 1]} : vector<8x96xf32> to vector<8x8xf32>
    %cst_12 = arith.constant dense<0.000000e+00> : vector<8x8xf32>
    %26 = tpu.matmul %23, %24, %cst_12 {dimension_numbers = #tpu.dot_dimension_numbers<[1], [1], [0], [0], [0, 0, 1, 0], [], []>} : vector<8x8xf32>, vector<8x8xf32>, vector<8x8xf32> -> vector<8x8xf32>
    %cst_13 = arith.constant dense<0xFF800000> : vector<8xf32>
    %27 = vector.multi_reduction <maximumf>, %26, %cst_13 [1] : vector<8x8xf32> to vector<8xf32>
    %28 = vector.shape_cast %27 : vector<8xf32> to vector<8x1xf32>
    %29 = vector.broadcast %28 : vector<8x1xf32> to vector<8x8xf32>
    %30 = arith.subf %26, %29 : vector<8x8xf32>
    %31 = math.exp %30 : vector<8x8xf32>
    %cst_14 = arith.constant dense<0.000000e+00> : vector<8xf32>
    %32 = vector.multi_reduction <add>, %31, %cst_14 [1] : vector<8x8xf32> to vector<8xf32>
    %33 = vector.shape_cast %32 : vector<8xf32> to vector<8x1xf32>
    %34 = tpu.reciprocal %33 {approx = true} : vector<8x1xf32> -> vector<8x1xf32>
    %35 = vector.broadcast %34 : vector<8x1xf32> to vector<8x8xf32>
    %36 = arith.mulf %31, %35 : vector<8x8xf32>
    %cst_15 = arith.constant dense<0.000000e+00> : vector<8x8xf32>
    %37 = tpu.matmul %36, %25, %cst_15 {dimension_numbers = #tpu.dot_dimension_numbers<[1], [0], [0], [1], [0, 0, 1, 1], [], []>} : vector<8x8xf32>, vector<8x8xf32>, vector<8x8xf32> -> vector<8x8xf32>
    %c0_16 = arith.constant 0 : index
    %c8 = arith.constant 8 : index
    %38 = vector.load %arg7[%c0_16, %c8] : memref<8x32xf32, #tpu.memory_space<vmem>>, vector<8x8xf32>
    tpu.vector_store %arg7[%c0_16, %c8], %37 {strides = array<i32>} : memref<8x32xf32, #tpu.memory_space<vmem>>, vector<8x8xf32>,
    %39 = vector.extract_strided_slice %6 {offsets = [0, 16], sizes = [8, 8], strides = [1, 1]} : vector<8x96xf32> to vector<8x8xf32>
    %40 = vector.extract_strided_slice %6 {offsets = [0, 48], sizes = [8, 8], strides = [1, 1]} : vector<8x96xf32> to vector<8x8xf32>
    %41 = vector.extract_strided_slice %6 {offsets = [0, 80], sizes = [8, 8], strides = [1, 1]} : vector<8x96xf32> to vector<8x8xf32>
    %cst_17 = arith.constant dense<0.000000e+00> : vector<8x8xf32>
    %42 = tpu.matmul %39, %40, %cst_17 {dimension_numbers = #tpu.dot_dimension_numbers<[1], [1], [0], [0], [0, 0, 1, 0], [], []>} : vector<8x8xf32>, vector<8x8xf32>, vector<8x8xf32> -> vector<8x8xf32>
    %cst_18 = arith.constant dense<0xFF800000> : vector<8xf32>
    %43 = vector.multi_reduction <maximumf>, %42, %cst_18 [1] : vector<8x8xf32> to vector<8xf32>
    %44 = vector.shape_cast %43 : vector<8xf32> to vector<8x1xf32>
    %45 = vector.broadcast %44 : vector<8x1xf32> to vector<8x8xf32>
    %46 = arith.subf %42, %45 : vector<8x8xf32>
    %47 = math.exp %46 : vector<8x8xf32>
    %cst_19 = arith.constant dense<0.000000e+00> : vector<8xf32>
    %48 = vector.multi_reduction <add>, %47, %cst_19 [1] : vector<8x8xf32> to vector<8xf32>
    %49 = vector.shape_cast %48 : vector<8xf32> to vector<8x1xf32>
    %50 = tpu.reciprocal %49 {approx = true} : vector<8x1xf32> -> vector<8x1xf32>
    %51 = vector.broadcast %50 : vector<8x1xf32> to vector<8x8xf32>
    %52 = arith.mulf %47, %51 : vector<8x8xf32>
    %cst_20 = arith.constant dense<0.000000e+00> : vector<8x8xf32>
    %53 = tpu.matmul %52, %41, %cst_20 {dimension_numbers = #tpu.dot_dimension_numbers<[1], [0], [0], [1], [0, 0, 1, 1], [], []>} : vector<8x8xf32>, vector<8x8xf32>, vector<8x8xf32> -> vector<8x8xf32>
    %c0_21 = arith.constant 0 : index
    %c16 = arith.constant 16 : index
    %54 = vector.load %arg7[%c0_21, %c16] : memref<8x32xf32, #tpu.memory_space<vmem>>, vector<8x8xf32>
    tpu.vector_store %arg7[%c0_21, %c16], %53 {strides = array<i32>} : memref<8x32xf32, #tpu.memory_space<vmem>>, vector<8x8xf32>,
    %55 = vector.extract_strided_slice %6 {offsets = [0, 24], sizes = [8, 8], strides = [1, 1]} : vector<8x96xf32> to vector<8x8xf32>
    %56 = vector.extract_strided_slice %6 {offsets = [0, 56], sizes = [8, 8], strides = [1, 1]} : vector<8x96xf32> to vector<8x8xf32>
    %57 = vector.extract_strided_slice %6 {offsets = [0, 88], sizes = [8, 8], strides = [1, 1]} : vector<8x96xf32> to vector<8x8xf32>
    %cst_22 = arith.constant dense<0.000000e+00> : vector<8x8xf32>
    %58 = tpu.matmul %55, %56, %cst_22 {dimension_numbers = #tpu.dot_dimension_numbers<[1], [1], [0], [0], [0, 0, 1, 0], [], []>} : vector<8x8xf32>, vector<8x8xf32>, vector<8x8xf32> -> vector<8x8xf32>
    %cst_23 = arith.constant dense<0xFF800000> : vector<8xf32>
    %59 = vector.multi_reduction <maximumf>, %58, %cst_23 [1] : vector<8x8xf32> to vector<8xf32>
    %60 = vector.shape_cast %59 : vector<8xf32> to vector<8x1xf32>
    %61 = vector.broadcast %60 : vector<8x1xf32> to vector<8x8xf32>
    %62 = arith.subf %58, %61 : vector<8x8xf32>
    %63 = math.exp %62 : vector<8x8xf32>
    %cst_24 = arith.constant dense<0.000000e+00> : vector<8xf32>
    %64 = vector.multi_reduction <add>, %63, %cst_24 [1] : vector<8x8xf32> to vector<8xf32>
    %65 = vector.shape_cast %64 : vector<8xf32> to vector<8x1xf32>
    %66 = tpu.reciprocal %65 {approx = true} : vector<8x1xf32> -> vector<8x1xf32>
    %67 = vector.broadcast %66 : vector<8x1xf32> to vector<8x8xf32>
    %68 = arith.mulf %63, %67 : vector<8x8xf32>
    %cst_25 = arith.constant dense<0.000000e+00> : vector<8x8xf32>
    %69 = tpu.matmul %68, %57, %cst_25 {dimension_numbers = #tpu.dot_dimension_numbers<[1], [0], [0], [1], [0, 0, 1, 1], [], []>} : vector<8x8xf32>, vector<8x8xf32>, vector<8x8xf32> -> vector<8x8xf32>
    %c0_26 = arith.constant 0 : index
    %c24 = arith.constant 24 : index
    %70 = vector.load %arg7[%c0_26, %c24] : memref<8x32xf32, #tpu.memory_space<vmem>>, vector<8x8xf32>
    tpu.vector_store %arg7[%c0_26, %c24], %69 {strides = array<i32>} : memref<8x32xf32, #tpu.memory_space<vmem>>, vector<8x8xf32>,
    %c0_27 = arith.constant 0 : index
    %c0_28 = arith.constant 0 : index
    %71 = vector.load %arg7[%c0_27, %c0_28] : memref<8x32xf32, #tpu.memory_space<vmem>>, vector<8x32xf32>
    %c0_29 = arith.constant 0 : index
    %c0_30 = arith.constant 0 : index
    %72 = vector.load %arg4[%c0_29, %c0_30] : memref<32x32xf32, #tpu.memory_space<vmem>>, vector<32x32xf32>
    %cst_31 = arith.constant dense<0.000000e+00> : vector<8x32xf32>
    %73 = tpu.matmul %71, %72, %cst_31 {dimension_numbers = #tpu.dot_dimension_numbers<[1], [0], [0], [1], [0, 0, 1, 1], [], []>} : vector<8x32xf32>, vector<32x32xf32>, vector<8x32xf32> -> vector<8x32xf32>
    %c0_32 = arith.constant 0 : index
    %c0_33 = arith.constant 0 : index
    %74 = vector.load %arg5[%c0_32, %c0_33] : memref<1x32xf32, #tpu.memory_space<vmem>>, vector<1x32xf32>
    %75 = vector.broadcast %74 : vector<1x32xf32> to vector<8x32xf32>
    %76 = arith.addf %73, %75 : vector<8x32xf32>
    %c0_34 = arith.constant 0 : index
    %c0_35 = arith.constant 0 : index
    %c0_36 = arith.constant 0 : index
    %77 = vector.load %arg6[%c0_34, %c0_35, %c0_36] : memref<1x8x32xf32, #tpu.memory_space<vmem>>, vector<1x8x32xf32>
    %78 = vector.shape_cast %77 : vector<1x8x32xf32> to vector<8x32xf32>
    %79 = vector.shape_cast %76 : vector<8x32xf32> to vector<1x8x32xf32>
    tpu.vector_store %arg6[%c0_34, %c0_35, %c0_36], %79 {strides = array<i32>} : memref<1x8x32xf32, #tpu.memory_space<vmem>>, vector<1x8x32xf32>,
    return
  }
  func.func @transform_0(%arg0: i32) -> (i32, i32, i32) {
    %c0_i32 = arith.constant 0 : i32
    %c0_i32_0 = arith.constant 0 : i32
    %c0_i32_1 = arith.constant 0 : i32
    return %arg0, %c0_i32, %c0_i32_0 : i32, i32, i32
  }
  func.func @transform_1(%arg0: i32) -> (i32, i32) {
    %c0_i32 = arith.constant 0 : i32
    %c0_i32_0 = arith.constant 0 : i32
    %c0_i32_1 = arith.constant 0 : i32
    return %c0_i32, %c0_i32_0 : i32, i32
  }
  func.func @transform_2(%arg0: i32) -> (i32, i32) {
    %c0_i32 = arith.constant 0 : i32
    %c0_i32_0 = arith.constant 0 : i32
    %c0_i32_1 = arith.constant 0 : i32
    return %c0_i32, %c0_i32_0 : i32, i32
  }
  func.func @transform_3(%arg0: i32) -> (i32, i32) {
    %c0_i32 = arith.constant 0 : i32
    %c0_i32_0 = arith.constant 0 : i32
    %c0_i32_1 = arith.constant 0 : i32
    return %c0_i32, %c0_i32_0 : i32, i32
  }
  func.func @transform_4(%arg0: i32) -> (i32, i32) {
    %c0_i32 = arith.constant 0 : i32
    %c0_i32_0 = arith.constant 0 : i32
    %c0_i32_1 = arith.constant 0 : i32
    return %c0_i32, %c0_i32_0 : i32, i32
  }
  func.func @transform_5(%arg0: i32) -> (i32, i32, i32) {
    %c0_i32 = arith.constant 0 : i32
    %c0_i32_0 = arith.constant 0 : i32
    %c0_i32_1 = arith.constant 0 : i32
    return %arg0, %c0_i32, %c0_i32_0 : i32, i32, i32
  }
}

</mosaic_0001>

<llo_original>
// kernel: tpu_custom_call.1
$region0: #{tpu_custom_call.1}
  #allocation0 [shape = 'u32[]', space=smem, size = 0x4, offset = 0x4, fixed_abs, tag = 'smem constant byte address 0x4 - core index']
  #allocation1 [shape = 'u32[72,128]{1,0:T(1,128)}', space=vmem, size = 0x9000, scoped, tag = 'internal scratch']
  #allocation2 [shape = 'f32[8,32]{1,0:T(8,128)}', space=vmem, size = 0x1000, scoped, tag = 'scratch operand']
  %s0 = inlined_call_operand.hbm [shape: f32[2,8,32], index: 0, kind: input, shape index: {}]
  %s1 = inlined_call_operand.hbm [shape: f32[32,96], index: 1, kind: input, shape index: {}]
  %s2 = inlined_call_operand.vmem [shape: f32[1,96], index: 2, kind: input, shape index: {}]
  %s3 = inlined_call_operand.hbm [shape: f32[32,32], index: 3, kind: input, shape index: {}]
  %s4 = inlined_call_operand.vmem [shape: f32[1,32], index: 4, kind: input, shape index: {}]
  %s5 = inlined_call_operand.hbm [shape: f32[2,8,32], index: 5, kind: output, shape index: {}]
  %s6 = sld [smem:[#allocation0]]
  $region65: #{tpu_custom_call.1} parent=0
    _
  %s8 = ssub.s32 1, %s6
  %s9 = scalar_select 0, %s8, %s6
  $region1: #{tpu_custom_call.1} parent=0
    #allocation3 [shape = 'u8[8192]{0}', space=vmem, size = 0x2000, scoped, tag = 'input window, operand 0']
    #allocation4 [shape = 's32[2]{0}', space=sflag, size = 0x8, scoped, tag = 'scoped memory for tpu_custom_call.1']
    #allocation5 [shape = 's32[2]{0}', space=sflag, size = 0x8, scoped, tag = 'scoped memory for tpu_custom_call.1']
    #allocation6 [shape = 'u8[16384]{0}', space=vmem, size = 0x4000, scoped, tag = 'input window, operand 1, single buffered']
    #allocation7 [shape = 's32[1]{0}', space=sflag, size = 0x4, scoped, tag = 'scoped memory for tpu_custom_call.1']
    #allocation8 [shape = 'u8[16384]{0}', space=vmem, size = 0x4000, scoped, tag = 'input window, operand 3, single buffered']
    #allocation9 [shape = 'u8[8192]{0}', space=vmem, size = 0x2000, scoped, tag = 'output window, operand 0']
    %10 = vsyncpa [#allocation4], 0
    %s11 = scalar_lea.sflag [#allocation4], 1
    %12 = vsyncpa %s11, 0
    %13 = vsyncpa [#allocation7], 0
    %14 = vsyncpa [#allocation5], 0
    %s15 = scalar_lea.sflag [#allocation5], 1
    %16 = vsyncpa %s15, 0
    loop: start=0, step=1, limit=4
    $region2: #{tpu_custom_call.1} parent=1 // loop_pre_header
      _
    $region3: #{tpu_custom_call.1} parent=1 // loop_header
      %s18 = sphi 0, %s22
      %p19 = scmp.ge.s32.totalorder %s18, 4
      %s28 = sphi 0, %s30
      %s31 = sphi 0, %s28
      %s32 = sphi 0, %s31
      %s48 = sphi 0, %s32
      %s52 = sphi 0, %s52
      %s54 = sphi 0, %s52
      %s55 = sphi 0, %s54
      %s69 = sphi 0, %s55
      %s73 = sphi 0, %s73
      %s75 = sphi 0, %s73
      %s76 = sphi 0, %s75
      %s90 = sphi 0, %s76
      %s94 = sphi 0, %s94
      %s96 = sphi 0, %s94
      %s97 = sphi 0, %s96
      %s111 = sphi 0, %s97
      %s115 = sphi 0, %s115
      %s117 = sphi 0, %s115
      %s118 = sphi 0, %s117
      %s132 = sphi 0, %s118
      %s138 = sphi 0, %s140
      %s141 = sphi 0, %s138
      %s142 = sphi 0, %s141
      %s158 = sphi 0, %s142
    $region4: #{tpu_custom_call.1} parent=1 // loop_header_branch
      %21 = sbr.rel (%p19) target = $region8
    $region5: #{tpu_custom_call.1} parent=1 // loop_body
      %s23 = ssub.s32 %s18, 1
      %s24 = ssub.s32 %s18, 2
      %s25 = sadd.s32 %s18, 1
      %s26 = ssub.s32 %s18, %s25
      %p27 = scmp.eq.s32.totalorder %s26, 0
      %s29 = sadd.s32 %s28, 1
      %s30 = scalar_select %p27, %s28, %s29
      %p33 = pneg %p27
      %p34 = scmp.eq.s32.totalorder %s18, 1
      %p35 = por %p33, %p34
      %p36 = scmp.ne.s32.totalorder %s28, %s31
      %p37 = scmp.eq.s32.totalorder %s18, 0
      %p38 = por %p36, %p37
      %p39 = scmp.ne.s32.totalorder %s28, %s31
      %p40 = scmp.eq.s32.totalorder %s23, 1
      %p41 = por %p39, %p40
      %p42 = scmp.ne.s32.totalorder %s31, %s32
      %p43 = scmp.eq.s32.totalorder %s23, 0
      %p44 = por %p42, %p43
      %p45 = scmp.ne.s32.totalorder %s31, %s32
      %p46 = scmp.eq.s32.totalorder %s24, 1
      %p47 = por %p45, %p46
      %p49 = scmp.ne.s32.totalorder %s32, %s48
      %p50 = scmp.eq.s32.totalorder %s24, 0
      %p51 = por %p49, %p50
      %s53 = sadd.s32 %s52, 1
      %p56 = scmp.eq.s32.totalorder %s18, 1
      %p57 = scmp.ne.s32.totalorder %s52, %s54
      %p58 = scmp.eq.s32.totalorder %s18, 0
      %p59 = por %p57, %p58
      %p60 = scmp.ne.s32.totalorder %s52, %s54
      %p61 = scmp.eq.s32.totalorder %s23, 1
      %p62 = por %p60, %p61
      %p63 = scmp.ne.s32.totalorder %s54, %s55
      %p64 = scmp.eq.s32.totalorder %s23, 0
      %p65 = por %p63, %p64
      %p66 = scmp.ne.s32.totalorder %s54, %s55
      %p67 = scmp.eq.s32.totalorder %s24, 1
      %p68 = por %p66, %p67
      %p70 = scmp.ne.s32.totalorder %s55, %s69
      %p71 = scmp.eq.s32.totalorder %s24, 0
      %p72 = por %p70, %p71
      %s74 = sadd.s32 %s73, 1
      %p77 = scmp.eq.s32.totalorder %s18, 1
      %p78 = scmp.ne.s32.totalorder %s73, %s75
      %p79 = scmp.eq.s32.totalorder %s18, 0
      %p80 = por %p78, %p79
      %p81 = scmp.ne.s32.totalorder %s73, %s75
      %p82 = scmp.eq.s32.totalorder %s23, 1
      %p83 = por %p81, %p82
      %p84 = scmp.ne.s32.totalorder %s75, %s76
      %p85 = scmp.eq.s32.totalorder %s23, 0
      %p86 = por %p84, %p85
      %p87 = scmp.ne.s32.totalorder %s75, %s76
      %p88 = scmp.eq.s32.totalorder %s24, 1
      %p89 = por %p87, %p88
      %p91 = scmp.ne.s32.totalorder %s76, %s90
      %p92 = scmp.eq.s32.totalorder %s24, 0
      %p93 = por %p91, %p92
      %s95 = sadd.s32 %s94, 1
      %p98 = scmp.eq.s32.totalorder %s18, 1
      %p99 = scmp.ne.s32.totalorder %s94, %s96
      %p100 = scmp.eq.s32.totalorder %s18, 0
      %p101 = por %p99, %p100
      %p102 = scmp.ne.s32.totalorder %s94, %s96
      %p103 = scmp.eq.s32.totalorder %s23, 1
      %p104 = por %p102, %p103
      %p105 = scmp.ne.s32.totalorder %s96, %s97
      %p106 = scmp.eq.s32.totalorder %s23, 0
      %p107 = por %p105, %p106
      %p108 = scmp.ne.s32.totalorder %s96, %s97
      %p109 = scmp.eq.s32.totalorder %s24, 1
      %p110 = por %p108, %p109
      %p112 = scmp.ne.s32.totalorder %s97, %s111
      %p113 = scmp.eq.s32.totalorder %s24, 0
      %p114 = por %p112, %p113
      %s116 = sadd.s32 %s115, 1
      %p119 = scmp.eq.s32.totalorder %s18, 1
      %p120 = scmp.ne.s32.totalorder %s115, %s117
      %p121 = scmp.eq.s32.totalorder %s18, 0
      %p122 = por %p120, %p121
      %p123 = scmp.ne.s32.totalorder %s115, %s117
      %p124 = scmp.eq.s32.totalorder %s23, 1
      %p125 = por %p123, %p124
      %p126 = scmp.ne.s32.totalorder %s117, %s118
      %p127 = scmp.eq.s32.totalorder %s23, 0
      %p128 = por %p126, %p127
      %p129 = scmp.ne.s32.totalorder %s117, %s118
      %p130 = scmp.eq.s32.totalorder %s24, 1
      %p131 = por %p129, %p130
      %p133 = scmp.ne.s32.totalorder %s118, %s132
      %p134 = scmp.eq.s32.totalorder %s24, 0
      %p135 = por %p133, %p134
      %s136 = ssub.s32 %s18, %s25
      %p137 = scmp.eq.s32.totalorder %s136, 0
      %s139 = sadd.s32 %s138, 1
      %s140 = scalar_select %p137, %s138, %s139
      %p143 = pneg %p137
      %p144 = scmp.eq.s32.totalorder %s18, 1
      %p145 = por %p143, %p144
      %p146 = scmp.ne.s32.totalorder %s138, %s141
      %p147 = scmp.eq.s32.totalorder %s18, 0
      %p148 = por %p146, %p147
      %p149 = scmp.ne.s32.totalorder %s138, %s141
      %p150 = scmp.eq.s32.totalorder %s23, 1
      %p151 = por %p149, %p150
      %p152 = scmp.ne.s32.totalorder %s141, %s142
      %p153 = scmp.eq.s32.totalorder %s23, 0
      %p154 = por %p152, %p153
      %p155 = scmp.ne.s32.totalorder %s141, %s142
      %p156 = scmp.eq.s32.totalorder %s24, 1
      %p157 = por %p155, %p156
      %p159 = scmp.ne.s32.totalorder %s142, %s158
      %p160 = scmp.eq.s32.totalorder %s24, 0
      %p161 = por %p159, %p160
      %p162 = scmp.le.s32.totalorder 1, %s18
      %p163 = scmp.lt.s32.totalorder %s18, 3
      %p164 = pnand %p162, %p163
      %p165 = pneg %p164
      // Predicated region
      $region9: #{tpu_custom_call.1} parent=5 // pred_check
        _
      $region10: #{tpu_custom_call.1} parent=5 // pred_check_branch
        %167 = sbr.rel (%p164) target = $region12
      $region11: #{tpu_custom_call.1} parent=5 // pred_region
        %s168 = ssub.s32 %s18, 1
        // Predicated region
        $region13: #{tpu_custom_call.1} parent=11 // pred_check
          %p169 = pneg %p65
        $region14: #{tpu_custom_call.1} parent=11 // pred_check_branch
          %171 = sbr.rel (%p169) target = $region16
        $region15: #{tpu_custom_call.1} parent=11 // pred_region
          %173 = vsyncadd [#allocation7], 0
          %s174 = sshll.u32 %s1, 4
          %s175 = int_to_ptr.hbm [resolvable:$true] %s174
          %s176 = sshll.u32 [#allocation6], 4
          %s177 = int_to_ptr.vmem [resolvable:$true] %s176
          %182 = dma.hbm_to_vmem [thread:$0]  %s175, 512, %s177, [#allocation7], 128, 128, 8
        $region16: #{tpu_custom_call.1} parent=11 // pred_fallthru
          _
        // Predicated region
        $region17: #{tpu_custom_call.1} parent=11 // pred_check
          %p183 = pneg %p86
        $region18: #{tpu_custom_call.1} parent=11 // pred_check_branch
          %185 = sbr.rel (%p183) target = $region20
        $region19: #{tpu_custom_call.1} parent=11 // pred_region
          _
        $region20: #{tpu_custom_call.1} parent=11 // pred_fallthru
          _
        // Predicated region
        $region21: #{tpu_custom_call.1} parent=11 // pred_check
          %p186 = pneg %p107
        $region22: #{tpu_custom_call.1} parent=11 // pred_check_branch
          %188 = sbr.rel (%p186) target = $region24
        $region23: #{tpu_custom_call.1} parent=11 // pred_region
          %190 = vsyncadd [#allocation7], 0
          %s191 = sshll.u32 %s3, 4
          %s192 = int_to_ptr.hbm [resolvable:$true] %s191
          %s193 = sshll.u32 [#allocation8], 4
          %s194 = int_to_ptr.vmem [resolvable:$true] %s193
          %199 = dma.hbm_to_vmem [thread:$0]  %s192, 512, %s194, [#allocation7], 128, 128, 8
        $region24: #{tpu_custom_call.1} parent=11 // pred_fallthru
          _
        // Predicated region
        $region25: #{tpu_custom_call.1} parent=11 // pred_check
          %p200 = pneg %p128
        $region26: #{tpu_custom_call.1} parent=11 // pred_check_branch
          %202 = sbr.rel (%p200) target = $region28
        $region27: #{tpu_custom_call.1} parent=11 // pred_region
          _
        $region28: #{tpu_custom_call.1} parent=11 // pred_fallthru
          _
      $region12: #{tpu_custom_call.1} parent=5 // pred_fallthru
        _
      %p203 = scmp.lt.s32.totalorder %s18, 2
      // Predicated region
      $region29: #{tpu_custom_call.1} parent=5 // pred_check
        %p204 = pneg %p203
      $region30: #{tpu_custom_call.1} parent=5 // pred_check_branch
        %206 = sbr.rel (%p204) target = $region32
      $region31: #{tpu_custom_call.1} parent=5 // pred_region
        // Predicated region
        $region33: #{tpu_custom_call.1} parent=31 // pred_check
          %p207 = pneg %p38
        $region34: #{tpu_custom_call.1} parent=31 // pred_check_branch
          %209 = sbr.rel (%p207) target = $region36
        $region35: #{tpu_custom_call.1} parent=31 // pred_region
          %s210 = sand.u32 %s28, 1
          %s211 = scalar_lea.sflag [#allocation4], %s210
          %s212 = sand.u32 %s28, 1
          %s213 = smul.addr %s212, 8
          %s214 = scalar_lea.vmem [#allocation3], %s213
          %216 = vsyncadd %s211, 0
          %s217 = smul.addr %s18, 8
          %s218 = scalar_lea.hbm %s0, %s217
          %s220 = sshll.u32 %s218, 4
          %s221 = int_to_ptr.hbm [resolvable:$true] %s220
          %s222 = sshll.u32 %s214, 4
          %s223 = int_to_ptr.vmem [resolvable:$true] %s222
          %225 = dma.hbm_to_vmem [thread:$0]  %s221, 128, %s223, %s211
        $region36: #{tpu_custom_call.1} parent=31 // pred_fallthru
          _
      $region32: #{tpu_custom_call.1} parent=5 // pred_fallthru
        _
      %p226 = scmp.le.s32.totalorder 1, %s18
      %p227 = scmp.lt.s32.totalorder %s18, 3
      %p228 = pnand %p226, %p227
      %p229 = pneg %p228
      // Predicated region
      $region37: #{tpu_custom_call.1} parent=5 // pred_check
        _
      $region38: #{tpu_custom_call.1} parent=5 // pred_check_branch
        %231 = sbr.rel (%p228) target = $region40
      $region39: #{tpu_custom_call.1} parent=5 // pred_region
        %s232 = ssub.s32 %s18, 1
        %s233 = sand.u32 %s31, 1
        %s234 = scalar_lea.sflag [#allocation4], %s233
        %s235 = sand.u32 %s31, 1
        %s236 = smul.addr %s235, 8
        %s237 = scalar_lea.vmem [#allocation3], %s236
        // Predicated region
        $region41: #{tpu_custom_call.1} parent=39 // pred_check
          %p238 = pneg %p44
        $region42: #{tpu_custom_call.1} parent=39 // pred_check_branch
          %240 = sbr.rel (%p238) target = $region44
        $region43: #{tpu_custom_call.1} parent=39 // pred_region
          %242 = dma.done %s234, 128
        $region44: #{tpu_custom_call.1} parent=39 // pred_fallthru
          _
        // Predicated region
        $region45: #{tpu_custom_call.1} parent=39 // pred_check
          %p243 = pneg %p65
        $region46: #{tpu_custom_call.1} parent=39 // pred_check_branch
          %245 = sbr.rel (%p243) target = $region48
        $region47: #{tpu_custom_call.1} parent=39 // pred_region
          %247 = dma.done [#allocation7], 512
        $region48: #{tpu_custom_call.1} parent=39 // pred_fallthru
          _
        // Predicated region
        $region49: #{tpu_custom_call.1} parent=39 // pred_check
          %p248 = pneg %p107
        $region50: #{tpu_custom_call.1} parent=39 // pred_check_branch
          %250 = sbr.rel (%p248) target = $region52
        $region51: #{tpu_custom_call.1} parent=39 // pred_region
          %252 = dma.done [#allocation7], 512
        $region52: #{tpu_custom_call.1} parent=39 // pred_fallthru
          _
        %s253 = sand.u32 %s31, 1
        %s254 = scalar_lea.sflag [#allocation4], %s253
        %s255 = sand.u32 %s31, 1
        %s256 = smul.addr %s255, 8
        %s257 = scalar_lea.vmem [#allocation3], %s256
        %p258 = pneg %p44
        %p259 = pneg %p41
        %p260 = pneg %p65
        %p261 = pneg %p62
        %p262 = pneg %p86
        %p263 = pneg %p83
        %p264 = pneg %p107
        %p265 = pneg %p104
        %p266 = pneg %p128
        %p267 = pneg %p125
        %p268 = pneg %p154
        %p269 = pneg %p151
        %s270 = sand.u32 %s141, 1
        %s271 = scalar_lea.sflag [#allocation5], %s270
        %s272 = sand.u32 %s141, 1
        %s273 = smul.addr %s272, 8
        %s274 = scalar_lea.vmem [#allocation9], %s273
        %v275 = vld [vmem:[%s237] sm:$0xff]
        %v276 = vld [vmem:[#allocation6] sm:$0xff]
        %v277 = vld [vmem:[#allocation6 + $0x8] sm:$0xff]
        %v278 = vld [vmem:[#allocation6 + $0x10] sm:$0xff]
        %v279 = vld [vmem:[#allocation6 + $0x18] sm:$0xff]
        %v280 = vld [vmem:[%s2] sm:$0x1]
        %v282 = vperm.slane %v280, 0
        %vm284 = vcmask 261120
        %v286 = vsel %vm284, %v275, 0
        %288 = vmatpush.msra.mxu0 0.0
        %289 = vmatpush.msra.mxu0 0.0
        %290 = vmatpush.msra.mxu0 0.0
        %291 = vmatpush.msra.mxu0 0.0
        %292 = vmatpush.msra.mxu0 0.0
        %293 = vmatpush.msra.mxu0 0.0
        %294 = vmatpush.msra.mxu0 0.0
        %295 = vmatpush.msra.mxu0 0.0
        %296 = vmatpush.msra.mxu0 0.0
        %297 = vmatpush.msra.mxu0 0.0
        %298 = vmatpush.msra.mxu0 0.0
        %299 = vmatpush.msra.mxu0 0.0
        %300 = vmatpush.msra.mxu0 %v279
        %301 = vmatpush.msra.mxu0 %v278
        %302 = vmatpush.msra.mxu0 %v277
        %303 = vmatpush.msra.mxu0 %v276
        %304 = vmatmul.f32.gmra.mxu0 %v286
        %v305 = vpop.f32.mrf.mxu0
        %v306 = vadd.f32 %v282, %v305
        %307 = vdwg.mxu0
        %309 = vrot.lane.b32.xlu0 %v306, 96
        %v310 = vpop.permute.xlu0 %309
        %vm311 = vcmask 64512
        %v312 = vsel %vm311, %v306, 0
        %v314 = vsel %vm311, %v310, 0
        %316 = vmatpush.xpose.msra.mxu0 0.0
        %317 = vmatpush.xpose.msra.mxu0 0.0
        %318 = vmatpush.xpose.msra.mxu0 0.0
        %319 = vmatpush.xpose.msra.mxu0 0.0
        %320 = vmatpush.xpose.msra.mxu0 0.0
        %321 = vmatpush.xpose.msra.mxu0 0.0
        %322 = vmatpush.xpose.msra.mxu0 0.0
        %323 = vmatpush.xpose.msra.mxu0 0.0
        %324 = vmatpush.xpose.msra.mxu0 0.0
        %325 = vmatpush.xpose.msra.mxu0 0.0
        %326 = vmatpush.xpose.msra.mxu0 0.0
        %327 = vmatpush.xpose.msra.mxu0 0.0
        %328 = vmatpush.xpose.msra.mxu0 0.0
        %329 = vmatpush.xpose.msra.mxu0 0.0
        %330 = vmatpush.xpose.msra.mxu0 0.0
        %331 = vmatpush.xpose.msra.mxu0 %v314
        %332 = vmatmul.f32.gmra.mxu0 %v312
        %v333 = vpop.f32.mrf.mxu0
        %v334 = vadd.f32 0.0, %v333
        %335 = vdwg.mxu0
        %v336 = vsel %vm311, %v334, -inf
        %337 = vmax.xlane.f32.xlu0 %v336
        %v338 = vpop.xlane.xlu0 %337
        %v339 = vsub.f32 %v334, %v338
        %v340 = vmul.f32 %v339, 1.442695
        %v341 = vpow.pop %v340
        %v342 = vsel %vm311, %v341, 0.0
        %343 = vadd.xlane.f32.xlu0 %v342
        %v344 = vpop.xlane.xlu0 %343
        %v345 = vrcp.pop %v344
        %v346 = vmul.f32 %v341, %v345
        %347 = vrot.lane.b32.xlu0 %v306, 64
        %v348 = vpop.permute.xlu0 %347
        %v351 = vsel %vm311, %v346, 0
        %353 = vmatpush.msra.mxu0 0.0
        %354 = vmatpush.msra.mxu0 0.0
        %355 = vmatpush.msra.mxu0 0.0
        %356 = vmatpush.msra.mxu0 0.0
        %357 = vmatpush.msra.mxu0 0.0
        %358 = vmatpush.msra.mxu0 0.0
        %359 = vmatpush.msra.mxu0 0.0
        %360 = vmatpush.msra.mxu0 0.0
        %361 = vmatpush.msra.mxu0 0.0
        %362 = vmatpush.msra.mxu0 0.0
        %363 = vmatpush.msra.mxu0 0.0
        %364 = vmatpush.msra.mxu0 0.0
        %365 = vmatpush.msra.mxu0 0.0
        %366 = vmatpush.msra.mxu0 0.0
        %367 = vmatpush.msra.mxu0 0.0
        %368 = vmatpush.msra.mxu0 %v348
        %369 = vmatmul.f32.gmra.mxu0 %v351
        %v370 = vpop.f32.mrf.mxu0
        %v371 = vadd.f32 0.0, %v370
        %372 = vdwg.mxu0
        %373 = vst.msk [vmem:[#allocation2] sm:$0xff] %vm311, %v371
        %374 = vrot.lane.b32.xlu0 %v306, 120
        %v375 = vpop.permute.xlu0 %374
        %376 = vrot.lane.b32.xlu0 %v306, 88
        %v377 = vpop.permute.xlu0 %376
        %v378 = vsel %vm311, %v375, 0
        %v380 = vsel %vm311, %v377, 0
        %382 = vmatpush.xpose.msra.mxu0 0.0
        %383 = vmatpush.xpose.msra.mxu0 0.0
        %384 = vmatpush.xpose.msra.mxu0 0.0
        %385 = vmatpush.xpose.msra.mxu0 0.0
        %386 = vmatpush.xpose.msra.mxu0 0.0
        %387 = vmatpush.xpose.msra.mxu0 0.0
        %388 = vmatpush.xpose.msra.mxu0 0.0
        %389 = vmatpush.xpose.msra.mxu0 0.0
        %390 = vmatpush.xpose.msra.mxu0 0.0
        %391 = vmatpush.xpose.msra.mxu0 0.0
        %392 = vmatpush.xpose.msra.mxu0 0.0
        %393 = vmatpush.xpose.msra.mxu0 0.0
        %394 = vmatpush.xpose.msra.mxu0 0.0
        %395 = vmatpush.xpose.msra.mxu0 0.0
        %396 = vmatpush.xpose.msra.mxu0 0.0
        %397 = vmatpush.xpose.msra.mxu0 %v380
        %398 = vmatmul.f32.gmra.mxu0 %v378
        %v399 = vpop.f32.mrf.mxu0
        %v400 = vadd.f32 0.0, %v399
        %401 = vdwg.mxu0
        %v402 = vsel %vm311, %v400, -inf
        %403 = vmax.xlane.f32.xlu0 %v402
        %v404 = vpop.xlane.xlu0 %403
        %v405 = vsub.f32 %v400, %v404
        %v406 = vmul.f32 %v405, 1.442695
        %v407 = vpow.pop %v406
        %v408 = vsel %vm311, %v407, 0.0
        %409 = vadd.xlane.f32.xlu0 %v408
        %v410 = vpop.xlane.xlu0 %409
        %v411 = vrcp.pop %v410
        %v412 = vmul.f32 %v407, %v411
        %413 = vrot.lane.b32.xlu0 %v306, 56
        %v414 = vpop.permute.xlu0 %413
        %v417 = vsel %vm311, %v412, 0
        %419 = vmatpush.msra.mxu0 0.0
        %420 = vmatpush.msra.mxu0 0.0
        %421 = vmatpush.msra.mxu0 0.0
        %422 = vmatpush.msra.mxu0 0.0
        %423 = vmatpush.msra.mxu0 0.0
        %424 = vmatpush.msra.mxu0 0.0
        %425 = vmatpush.msra.mxu0 0.0
        %426 = vmatpush.msra.mxu0 0.0
        %427 = vmatpush.msra.mxu0 0.0
        %428 = vmatpush.msra.mxu0 0.0
        %429 = vmatpush.msra.mxu0 0.0
        %430 = vmatpush.msra.mxu0 0.0
        %431 = vmatpush.msra.mxu0 0.0
        %432 = vmatpush.msra.mxu0 0.0
        %433 = vmatpush.msra.mxu0 0.0
        %434 = vmatpush.msra.mxu0 %v414
        %435 = vmatmul.f32.gmra.mxu0 %v417
        %v436 = vpop.f32.mrf.mxu0
        %v437 = vadd.f32 0.0, %v436
        %438 = vdwg.mxu0
        %440 = vrot.lane.b32.xlu0 %v437, 8
        %v441 = vpop.permute.xlu0 %440
        %vm443 = vcmask 130112
        %444 = vst.msk [vmem:[#allocation2] sm:$0xff] %vm443, %v441
        %445 = vrot.lane.b32.xlu0 %v306, 112
        %v446 = vpop.permute.xlu0 %445
        %447 = vrot.lane.b32.xlu0 %v306, 80
        %v448 = vpop.permute.xlu0 %447
        %v449 = vsel %vm311, %v446, 0
        %v451 = vsel %vm311, %v448, 0
        %453 = vmatpush.xpose.msra.mxu0 0.0
        %454 = vmatpush.xpose.msra.mxu0 0.0
        %455 = vmatpush.xpose.msra.mxu0 0.0
        %456 = vmatpush.xpose.msra.mxu0 0.0
        %457 = vmatpush.xpose.msra.mxu0 0.0
        %458 = vmatpush.xpose.msra.mxu0 0.0
        %459 = vmatpush.xpose.msra.mxu0 0.0
        %460 = vmatpush.xpose.msra.mxu0 0.0
        %461 = vmatpush.xpose.msra.mxu0 0.0
        %462 = vmatpush.xpose.msra.mxu0 0.0
        %463 = vmatpush.xpose.msra.mxu0 0.0
        %464 = vmatpush.xpose.msra.mxu0 0.0
        %465 = vmatpush.xpose.msra.mxu0 0.0
        %466 = vmatpush.xpose.msra.mxu0 0.0
        %467 = vmatpush.xpose.msra.mxu0 0.0
        %468 = vmatpush.xpose.msra.mxu0 %v451
        %469 = vmatmul.f32.gmra.mxu0 %v449
        %v470 = vpop.f32.mrf.mxu0
        %v471 = vadd.f32 0.0, %v470
        %472 = vdwg.mxu0
        %v473 = vsel %vm311, %v471, -inf
        %474 = vmax.xlane.f32.xlu0 %v473
        %v475 = vpop.xlane.xlu0 %474
        %v476 = vsub.f32 %v471, %v475
        %v477 = vmul.f32 %v476, 1.442695
        %v478 = vpow.pop %v477
        %v479 = vsel %vm311, %v478, 0.0
        %480 = vadd.xlane.f32.xlu0 %v479
        %v481 = vpop.xlane.xlu0 %480
        %v482 = vrcp.pop %v481
        %v483 = vmul.f32 %v478, %v482
        %484 = vrot.lane.b32.xlu0 %v306, 48
        %v485 = vpop.permute.xlu0 %484
        %v488 = vsel %vm311, %v483, 0
        %490 = vmatpush.msra.mxu0 0.0
        %491 = vmatpush.msra.mxu0 0.0
        %492 = vmatpush.msra.mxu0 0.0
        %493 = vmatpush.msra.mxu0 0.0
        %494 = vmatpush.msra.mxu0 0.0
        %495 = vmatpush.msra.mxu0 0.0
        %496 = vmatpush.msra.mxu0 0.0
        %497 = vmatpush.msra.mxu0 0.0
        %498 = vmatpush.msra.mxu0 0.0
        %499 = vmatpush.msra.mxu0 0.0
        %500 = vmatpush.msra.mxu0 0.0
        %501 = vmatpush.msra.mxu0 0.0
        %502 = vmatpush.msra.mxu0 0.0
        %503 = vmatpush.msra.mxu0 0.0
        %504 = vmatpush.msra.mxu0 0.0
        %505 = vmatpush.msra.mxu0 %v485
        %506 = vmatmul.f32.gmra.mxu0 %v488
        %v507 = vpop.f32.mrf.mxu0
        %v508 = vadd.f32 0.0, %v507
        %509 = vdwg.mxu0
        %511 = vrot.lane.b32.xlu0 %v508, 16
        %v512 = vpop.permute.xlu0 %511
        %vm514 = vcmask 195712
        %515 = vst.msk [vmem:[#allocation2] sm:$0xff] %vm514, %v512
        %516 = vrot.lane.b32.xlu0 %v306, 104
        %v517 = vpop.permute.xlu0 %516
        %518 = vrot.lane.b32.xlu0 %v306, 72
        %v519 = vpop.permute.xlu0 %518
        %v520 = vsel %vm311, %v517, 0
        %v522 = vsel %vm311, %v519, 0
        %524 = vmatpush.xpose.msra.mxu0 0.0
        %525 = vmatpush.xpose.msra.mxu0 0.0
        %526 = vmatpush.xpose.msra.mxu0 0.0
        %527 = vmatpush.xpose.msra.mxu0 0.0
        %528 = vmatpush.xpose.msra.mxu0 0.0
        %529 = vmatpush.xpose.msra.mxu0 0.0
        %530 = vmatpush.xpose.msra.mxu0 0.0
        %531 = vmatpush.xpose.msra.mxu0 0.0
        %532 = vmatpush.xpose.msra.mxu0 0.0
        %533 = vmatpush.xpose.msra.mxu0 0.0
        %534 = vmatpush.xpose.msra.mxu0 0.0
        %535 = vmatpush.xpose.msra.mxu0 0.0
        %536 = vmatpush.xpose.msra.mxu0 0.0
        %537 = vmatpush.xpose.msra.mxu0 0.0
        %538 = vmatpush.xpose.msra.mxu0 0.0
        %539 = vmatpush.xpose.msra.mxu0 %v522
        %540 = vmatmul.f32.gmra.mxu0 %v520
        %v541 = vpop.f32.mrf.mxu0
        %v542 = vadd.f32 0.0, %v541
        %543 = vdwg.mxu0
        %v544 = vsel %vm311, %v542, -inf
        %545 = vmax.xlane.f32.xlu0 %v544
        %v546 = vpop.xlane.xlu0 %545
        %v547 = vsub.f32 %v542, %v546
        %v548 = vmul.f32 %v547, 1.442695
        %v549 = vpow.pop %v548
        %v550 = vsel %vm311, %v549, 0.0
        %551 = vadd.xlane.f32.xlu0 %v550
        %v552 = vpop.xlane.xlu0 %551
        %v553 = vrcp.pop %v552
        %v554 = vmul.f32 %v549, %v553
        %555 = vrot.lane.b32.xlu0 %v306, 40
        %v556 = vpop.permute.xlu0 %555
        %v559 = vsel %vm311, %v554, 0
        %561 = vmatpush.msra.mxu0 0.0
        %562 = vmatpush.msra.mxu0 0.0
        %563 = vmatpush.msra.mxu0 0.0
        %564 = vmatpush.msra.mxu0 0.0
        %565 = vmatpush.msra.mxu0 0.0
        %566 = vmatpush.msra.mxu0 0.0
        %567 = vmatpush.msra.mxu0 0.0
        %568 = vmatpush.msra.mxu0 0.0
        %569 = vmatpush.msra.mxu0 0.0
        %570 = vmatpush.msra.mxu0 0.0
        %571 = vmatpush.msra.mxu0 0.0
        %572 = vmatpush.msra.mxu0 0.0
        %573 = vmatpush.msra.mxu0 0.0
        %574 = vmatpush.msra.mxu0 0.0
        %575 = vmatpush.msra.mxu0 0.0
        %576 = vmatpush.msra.mxu0 %v556
        %577 = vmatmul.f32.gmra.mxu0 %v559
        %v578 = vpop.f32.mrf.mxu0
        %v579 = vadd.f32 0.0, %v578
        %580 = vdwg.mxu0
        %582 = vrot.lane.b32.xlu0 %v579, 24
        %v583 = vpop.permute.xlu0 %582
        %vm585 = vcmask 261312
        %586 = vst.msk [vmem:[#allocation2] sm:$0xff] %vm585, %v583
        %v587 = vld [vmem:[#allocation2] sm:$0xff]
        %v588 = vld [vmem:[#allocation8] sm:$0xff]
        %v589 = vld [vmem:[#allocation8 + $0x8] sm:$0xff]
        %v590 = vld [vmem:[#allocation8 + $0x10] sm:$0xff]
        %v591 = vld [vmem:[#allocation8 + $0x18] sm:$0xff]
        %v592 = vld [vmem:[%s4] sm:$0x1]
        %v594 = vperm.slane %v592, 0
        %v597 = vsel %vm284, %v587, 0
        %599 = vmatpush.msra.mxu0 0.0
        %600 = vmatpush.msra.mxu0 0.0
        %601 = vmatpush.msra.mxu0 0.0
        %602 = vmatpush.msra.mxu0 0.0
        %603 = vmatpush.msra.mxu0 0.0
        %604 = vmatpush.msra.mxu0 0.0
        %605 = vmatpush.msra.mxu0 0.0
        %606 = vmatpush.msra.mxu0 0.0
        %607 = vmatpush.msra.mxu0 0.0
        %608 = vmatpush.msra.mxu0 0.0
        %609 = vmatpush.msra.mxu0 0.0
        %610 = vmatpush.msra.mxu0 0.0
        %611 = vmatpush.msra.mxu0 %v591
        %612 = vmatpush.msra.mxu0 %v590
        %613 = vmatpush.msra.mxu0 %v589
        %614 = vmatpush.msra.mxu0 %v588
        %615 = vmatmul.f32.gmra.mxu0 %v597
        %v616 = vpop.f32.mrf.mxu0
        %v617 = vadd.f32 %v594, %v616
        %618 = vdwg.mxu0
        %619 = vst.msk [vmem:[%s274] sm:$0xff] %vm284, %v617
        %s620 = sand.u32 %s141, 1
        %s621 = scalar_lea.sflag [#allocation5], %s620
        %s622 = sand.u32 %s141, 1
        %s623 = smul.addr %s622, 8
        %s624 = scalar_lea.vmem [#allocation9], %s623
        // Predicated region
        $region53: #{tpu_custom_call.1} parent=39 // pred_check
          %p625 = pneg %p151
        $region54: #{tpu_custom_call.1} parent=39 // pred_check_branch
          %627 = sbr.rel (%p625) target = $region56
        $region55: #{tpu_custom_call.1} parent=39 // pred_region
          %629 = vsyncadd %s621, 0
          %s630 = smul.addr %s23, 8
          %s631 = scalar_lea.hbm %s5, %s630
          %s633 = sshll.u32 %s624, 4
          %s634 = int_to_ptr.vmem [resolvable:$true] %s633
          %s635 = sshll.u32 %s631, 4
          %s636 = int_to_ptr.hbm [resolvable:$true] %s635
          %638 = dma.vmem_to_hbm [thread:$0]  %s634, 128, %s636, %s621
        $region56: #{tpu_custom_call.1} parent=39 // pred_fallthru
          _
      $region40: #{tpu_custom_call.1} parent=5 // pred_fallthru
        _
      %p639 = scmp.le.s32.totalorder 2, %s18
      // Predicated region
      $region57: #{tpu_custom_call.1} parent=5 // pred_check
        %p640 = pneg %p639
      $region58: #{tpu_custom_call.1} parent=5 // pred_check_branch
        %642 = sbr.rel (%p640) target = $region60
      $region59: #{tpu_custom_call.1} parent=5 // pred_region
        %s643 = ssub.s32 %s18, 2
        // Predicated region
        $region61: #{tpu_custom_call.1} parent=59 // pred_check
          %p644 = pneg %p157
        $region62: #{tpu_custom_call.1} parent=59 // pred_check_branch
          %646 = sbr.rel (%p644) target = $region64
        $region63: #{tpu_custom_call.1} parent=59 // pred_region
          %s647 = sand.u32 %s142, 1
          %s648 = scalar_lea.sflag [#allocation5], %s647
          %s649 = sand.u32 %s142, 1
          %s650 = smul.addr %s649, 8
          %s651 = scalar_lea.vmem [#allocation9], %s650
          %653 = dma.done %s648, 128
        $region64: #{tpu_custom_call.1} parent=59 // pred_fallthru
          _
      $region60: #{tpu_custom_call.1} parent=5 // pred_fallthru
        _
    $region6: #{tpu_custom_call.1} parent=1 // loop_footer
      %s22 = sadd.s32 1, %s18
    $region7: #{tpu_custom_call.1} parent=1 // loop_footer_branch
      %17 = sbr.rel target = $region3
    $region8: #{tpu_custom_call.1} parent=1 // loop_exit
      _
    %654 = vsyncpa [#allocation4], 1
    %s655 = scalar_lea.sflag [#allocation4], 1
    %656 = vsyncpa %s655, 1
    %657 = vsyncpa [#allocation7], 1
    %658 = vsyncpa [#allocation5], 1
    %s659 = scalar_lea.sflag [#allocation5], 1
    %660 = vsyncpa %s659, 1

</llo_original>
